<compile_context>
chip_gen: v5e
topology: v5e:2x2
jax: 0.10.0
libtpu: 0.0.40
codegen_flags: <defaults>
</compile_context>

<pallas_src>
import math

import jax
import jax.numpy as jnp
from jax import lax
from jax.experimental import pallas as pl
from jax.experimental.pallas import tpu as pltpu


IN_FEATURES = 160
OUT_FEATURES = 6
S = 30.0
M = 0.7
SUB = 1
EASY_MARGIN = False

COS_M = math.cos(M)
SIN_M = math.sin(M)
TH = math.cos(math.pi - M)
MM = math.sin(math.pi - M) * M
EPS = 1e-12  # torch F.normalize default eps


def arc_margin_kernel(x_ref, label_ref, out_ref):
    x = x_ref[...].astype(jnp.float32)          # (TB, D)
    label = label_ref[...]                      # (TB, 1) int32

    # F.normalize(x, p=2, dim=1, eps=1e-12):
    #   1 / max(||x||, eps) == rsqrt(max(||x||^2, eps^2))
    # -> single EUP rsqrt on the narrow (TB,1) column, then ONE full-width
    #    broadcast multiply (no full-width divide).
    sumsq = jnp.sum(x * x, axis=1, keepdims=True)            # (TB, 1) XLU reduce
    inv_norm = lax.rsqrt(jnp.maximum(sumsq, EPS * EPS))       # (TB, 1) EUP
    cosine = x * inv_norm                                     # (TB, D)

    # self.sub == 1 -> no view/max branch.
    # TODO(synk): sub > 1 path (view(-1, out, sub).max(2)) not implemented.

    # Clamp only guards against rounding pushing cosine^2 a hair above 1
    # (mathematically cosine^2 <= 1 for an L2-normalized row).
    sine = jnp.sqrt(jnp.maximum(1.0 - cosine * cosine, 0.0))
    phi = cosine * COS_M - sine * SIN_M
    if EASY_MARGIN:
        phi = jnp.where(cosine > 0, phi, cosine)
    else:
        phi = jnp.where(cosine - TH > 0, phi, cosine - MM)

    # one_hot blend collapsed to a single vselect:
    #   one_hot*phi + (1-one_hot)*cosine  ==  where(col == label, phi, cosine)
    tb, d = cosine.shape
    col_idx = lax.broadcasted_iota(jnp.int32, (tb, d), 1)
    output = jnp.where(col_idx == label, phi, cosine) * S
    out_ref[...] = output.astype(out_ref.dtype)


def arc_margin_forward(x, label, weight=None, *, tb=1024, out_dtype=jnp.float32):
    """x: (B, IN_FEATURES) f32, label: (B,) int32.

    `weight` is accepted for parity with the PyTorch module signature but is
    unused: the reference forward overwrites the weight matmul with
    F.normalize(x), so the result does not depend on it.
    Returns (B, IN_FEATURES), matching the reference overwrite.
    """
    del weight  # dead in the reference forward; deliberately not DMA'd
    B, D = x.shape
    label2d = label.astype(jnp.int32).reshape(B, 1)

    if B <= tb:
        tb_eff = B                           # single full-array block
        pad = 0
    else:
        tb_eff = max(8, (tb // 8) * 8)       # keep sublane alignment
        pad = (-B) % tb_eff
    if pad:
        x = jnp.pad(x, ((0, pad), (0, 0)))
        label2d = jnp.pad(label2d, ((0, pad), (0, 0)))
    Bp = B + pad

    # TODO(synk): for very large B, a lane-dense transposed layout (B on lanes,
    # multiple of 128) would remove the masked-store tail from D=160; skipped
    # because the wrapper transpose only pays off at scale.
    out = pl.pallas_call(
        arc_margin_kernel,
        out_shape=jax.ShapeDtypeStruct((Bp, D), out_dtype),
        grid_spec=pltpu.PrefetchScalarGridSpec(
            num_scalar_prefetch=0,
            grid=(Bp // tb_eff,),
            in_specs=[
                pl.BlockSpec((tb_eff, D), lambda i: (i, 0)),   # x tile
                pl.BlockSpec((tb_eff, 1), lambda i: (i, 0)),   # label tile
            ],
            out_specs=pl.BlockSpec((tb_eff, D), lambda i: (i, 0)),
        ),
        compiler_params=pltpu.CompilerParams(
            dimension_semantics=("parallel",),
            vmem_limit_bytes=64 * 1024 * 1024,
        ),
    )(x, label2d)
    return out[:B] if pad else out


def _reference(x, weight, label):
    # Pure-JAX mirror of the PyTorch forward (including the overwrite "bug").
    del weight
    norm = jnp.sqrt(jnp.sum(x * x, axis=1, keepdims=True))
    cosine = x / jnp.maximum(norm, EPS)
    sine = jnp.sqrt(jnp.maximum(1.0 - cosine ** 2, 0.0))
    phi = cosine * COS_M - sine * SIN_M
    if EASY_MARGIN:
        phi = jnp.where(cosine > 0, phi, cosine)
    else:
        phi = jnp.where(cosine - TH > 0, phi, cosine - MM)
    one_hot = jax.nn.one_hot(label, cosine.shape[1], dtype=jnp.float32)
    return (one_hot * phi + (1.0 - one_hot) * cosine) * S


if __name__ == "__main__":
    key = jax.random.PRNGKey(0)
    kx, kw, kl = jax.random.split(key, 3)

    B = 8
    x = jax.random.normal(kx, (B, IN_FEATURES), dtype=jnp.float32)

    # Deterministic xavier_uniform init for weight (unused by the forward,
    # constructed only for module fidelity).
    fan_out, fan_in = OUT_FEATURES * SUB, IN_FEATURES
    bound = math.sqrt(6.0 / (fan_in + fan_out))
    weight = jax.random.uniform(kw, (fan_out, fan_in), dtype=jnp.float32,
                                minval=-bound, maxval=bound)

    label = jax.random.randint(kl, (B,), 0, OUT_FEATURES, dtype=jnp.int32)

    out = arc_margin_forward(x, label, weight)
    out = jax.block_until_ready(out)

    ref = _reference(x, weight, label)
    assert out.shape == (B, IN_FEATURES)
    assert jnp.allclose(out, ref, atol=1e-5, rtol=1e-5)

    print("KERNEL_OK")
</pallas_src>

<mosaic_0001>
module attributes {stable_mosaic.version = 11 : i64} {
  func.func @arc_margin_kernel(%arg0: i32, %arg1: memref<8x160xf32, #tpu.memory_space<vmem>>, %arg2: memref<8x1xi32, #tpu.memory_space<vmem>>, %arg3: memref<8x160xf32, #tpu.memory_space<vmem>>) attributes {dimension_semantics = [#tpu.dimension_semantics<parallel>], iteration_bounds = array<i64: 1>, scalar_prefetch = 0 : i64, scratch_operands = 0 : i64, tpu.core_type = #tpu.core_type<tc>, window_params = [{transform_indices = @transform_0, window_bounds = array<i64: 8, 160>}, {transform_indices = @transform_1, window_bounds = array<i64: 8, 1>}, {transform_indices = @transform_2, window_bounds = array<i64: 8, 160>}]} {
    %c0 = arith.constant 0 : index
    %c0_0 = arith.constant 0 : index
    %0 = vector.load %arg1[%c0, %c0_0] : memref<8x160xf32, #tpu.memory_space<vmem>>, vector<8x160xf32>
    %c0_1 = arith.constant 0 : index
    %c0_2 = arith.constant 0 : index
    %1 = vector.load %arg2[%c0_1, %c0_2] : memref<8x1xi32, #tpu.memory_space<vmem>>, vector<8x1xi32>
    %2 = arith.mulf %0, %0 : vector<8x160xf32>
    %cst = arith.constant dense<0.000000e+00> : vector<8xf32>
    %3 = vector.multi_reduction <add>, %2, %cst [1] : vector<8x160xf32> to vector<8xf32>
    %4 = vector.shape_cast %3 : vector<8xf32> to vector<8x1xf32>
    %cst_3 = arith.constant 1.000000e-24 : f32
    %5 = vector.broadcast %cst_3 : f32 to vector<8x1xf32>
    %6 = arith.maximumf %4, %5 : vector<8x1xf32>
    %7 = math.rsqrt %6 : vector<8x1xf32>
    %8 = vector.broadcast %7 : vector<8x1xf32> to vector<8x160xf32>
    %9 = arith.mulf %0, %8 : vector<8x160xf32>
    %10 = arith.mulf %9, %9 : vector<8x160xf32>
    %cst_4 = arith.constant 1.000000e+00 : f32
    %11 = vector.broadcast %cst_4 : f32 to vector<8x160xf32>
    %12 = arith.subf %11, %10 : vector<8x160xf32>
    %cst_5 = arith.constant 0.000000e+00 : f32
    %13 = vector.broadcast %cst_5 : f32 to vector<8x160xf32>
    %14 = arith.maximumf %12, %13 : vector<8x160xf32>
    %15 = math.sqrt %14 : vector<8x160xf32>
    %cst_6 = arith.constant 0.764842212 : f32
    %16 = vector.broadcast %cst_6 : f32 to vector<8x160xf32>
    %17 = arith.mulf %9, %16 : vector<8x160xf32>
    %cst_7 = arith.constant 0.644217669 : f32
    %18 = vector.broadcast %cst_7 : f32 to vector<8x160xf32>
    %19 = arith.mulf %15, %18 : vector<8x160xf32>
    %20 = arith.subf %17, %19 : vector<8x160xf32>
    %cst_8 = arith.constant -0.764842212 : f32
    %21 = vector.broadcast %cst_8 : f32 to vector<8x160xf32>
    %22 = arith.subf %9, %21 : vector<8x160xf32>
    %cst_9 = arith.constant 0.000000e+00 : f32
    %23 = vector.broadcast %cst_9 : f32 to vector<8x160xf32>
    %24 = arith.cmpf ogt, %22, %23 : vector<8x160xf32>
    %cst_10 = arith.constant 0.450952381 : f32
    %25 = vector.broadcast %cst_10 : f32 to vector<8x160xf32>
    %26 = arith.subf %9, %25 : vector<8x160xf32>
    %27 = arith.select %24, %20, %26 : vector<8x160xi1>, vector<8x160xf32>
    %28 = tpu.iota {dimensions = array<i32: 1>} : vector<8x160xi32>
    %29 = vector.broadcast %1 : vector<8x1xi32> to vector<8x160xi32>
    %30 = arith.cmpi eq, %28, %29 : vector<8x160xi32>
    %31 = arith.select %30, %27, %9 : vector<8x160xi1>, vector<8x160xf32>
    %cst_11 = arith.constant 3.000000e+01 : f32
    %32 = vector.broadcast %cst_11 : f32 to vector<8x160xf32>
    %33 = arith.mulf %31, %32 : vector<8x160xf32>
    %c0_12 = arith.constant 0 : index
    %c0_13 = arith.constant 0 : index
    %34 = vector.load %arg3[%c0_12, %c0_13] : memref<8x160xf32, #tpu.memory_space<vmem>>, vector<8x160xf32>
    tpu.vector_store %arg3[%c0_12, %c0_13], %33 {strides = array<i32>} : memref<8x160xf32, #tpu.memory_space<vmem>>, vector<8x160xf32>,
    return
  }
  func.func @transform_0(%arg0: i32) -> (i32, i32) {
    %c0_i32 = arith.constant 0 : i32
    %c0_i32_0 = arith.constant 0 : i32
    return %arg0, %c0_i32 : i32, i32
  }
  func.func @transform_1(%arg0: i32) -> (i32, i32) {
    %c0_i32 = arith.constant 0 : i32
    %c0_i32_0 = arith.constant 0 : i32
    return %arg0, %c0_i32 : i32, i32
  }
  func.func @transform_2(%arg0: i32) -> (i32, i32) {
    %c0_i32 = arith.constant 0 : i32
    %c0_i32_0 = arith.constant 0 : i32
    return %arg0, %c0_i32 : i32, i32
  }
}

</mosaic_0001>

<llo_original>
// kernel: tpu_custom_call.1
$region0: #{tpu_custom_call.1}
  #allocation0 [shape = 'u32[]', space=smem, size = 0x4, offset = 0x4, fixed_abs, tag = 'smem constant byte address 0x4 - core index']
  #allocation1 [shape = 'u32[72,128]{1,0:T(1,128)}', space=vmem, size = 0x9000, scoped, tag = 'internal scratch']
  %s0 = inlined_call_operand.hbm [shape: f32[8,160], index: 0, kind: input, shape index: {}]
  %s1 = inlined_call_operand.vmem [shape: s32[8,1], index: 1, kind: input, shape index: {}]
  %s2 = inlined_call_operand.hbm [shape: f32[8,160], index: 2, kind: output, shape index: {}]
  %s3 = sld [smem:[#allocation0]]
  $region22: #{tpu_custom_call.1} parent=0
    _
  %s5 = ssub.s32 1, %s3
  %s6 = scalar_select 0, %s5, %s3
  $region1: #{tpu_custom_call.1} parent=0
    #allocation2 [shape = 'u8[8192]{0}', space=vmem, size = 0x2000, scoped, tag = 'input window, operand 0, single buffered']
    #allocation3 [shape = 's32[1]{0}', space=sflag, size = 0x4, scoped, tag = 'scoped memory for tpu_custom_call.1']
    #allocation4 [shape = 's32[1]{0}', space=sflag, size = 0x4, scoped, tag = 'scoped memory for tpu_custom_call.1']
    #allocation5 [shape = 'u8[8192]{0}', space=vmem, size = 0x2000, scoped, tag = 'output window, operand 0, single buffered']
    %7 = vsyncpa [#allocation3], 0
    %8 = vsyncpa [#allocation4], 0
    // Predicated region
    $region2: #{tpu_custom_call.1} parent=1 // pred_check
      _
    $region3: #{tpu_custom_call.1} parent=1 // pred_check_branch
      %10 = sbr.rel (0) target = $region5
    $region4: #{tpu_custom_call.1} parent=1 // pred_region
      %12 = vsyncadd [#allocation3], 0
      %s14 = sshll.u32 %s0, 4
      %s15 = int_to_ptr.hbm [resolvable:$true] %s14
      %s16 = sshll.u32 [#allocation2], 4
      %s17 = int_to_ptr.vmem [resolvable:$true] %s16
      %19 = dma.hbm_to_vmem [thread:$0]  %s15, 256, %s17, [#allocation3]
    $region5: #{tpu_custom_call.1} parent=1 // pred_fallthru
      _
    // Predicated region
    $region6: #{tpu_custom_call.1} parent=1 // pred_check
      _
    $region7: #{tpu_custom_call.1} parent=1 // pred_check_branch
      %21 = sbr.rel (0) target = $region9
    $region8: #{tpu_custom_call.1} parent=1 // pred_region
      _
    $region9: #{tpu_custom_call.1} parent=1 // pred_fallthru
      _
    // Predicated region
    $region10: #{tpu_custom_call.1} parent=1 // pred_check
      _
    $region11: #{tpu_custom_call.1} parent=1 // pred_check_branch
      %23 = sbr.rel (0) target = $region13
    $region12: #{tpu_custom_call.1} parent=1 // pred_region
      %25 = dma.done [#allocation3], 256
    $region13: #{tpu_custom_call.1} parent=1 // pred_fallthru
      _
    %v26 = vld [vmem:[#allocation2] sm:$0xff]
    %v27 = vld [vmem:[#allocation2 + $0x8] sm:$0xff]
    %v28 = vld [vmem:[%s1] sm:$0xff]
    %v29 = vmul.f32 %v26, %v26
    %v30 = vmul.f32 %v27, %v27
    %vm31 = vcmask 261120
    %v32 = vsel %vm31, %v30, 0.0
    %v33 = vadd.f32 %v29, %v32
    %34 = vadd.xlane.f32.xlu0 %v33
    %v35 = vpop.xlane.xlu0 %34
    %v36 = vmax.f32 %v35, 1e-24
    %v37 = vrsqrt.pop %v36
    %v38 = vmul.f32 %v37, %v36
    %v39 = vmul.f32 %v38, %v37
    %v40 = vmul.f32 0.5, %v39
    %v41 = vsub.f32 1.5, %v40
    %v42 = vmul.f32 %v37, %v41
    %vm43 = vweird.f32 %v36
    %vm44 = vweird.f32 %v37
    %vm45 = vmor %vm43, %vm44
    %v46 = vsel %vm45, %v37, %v42
    %v47 = vmul.f32 %v26, %v46
    %v48 = vmul.f32 %v27, %v46
    %v49 = vmul.f32 %v47, %v47
    %v50 = vmul.f32 %v48, %v48
    %v51 = vsub.f32 1.0, %v49
    %v52 = vsub.f32 1.0, %v50
    %v53 = vmax.f32 %v51, 0.0
    %v54 = vmax.f32 %v52, 0.0
    %v55 = vrsqrt.pop %v53
    %v56 = vmul.f32 %v55, %v53
    %v57 = vmul.f32 %v56, %v55
    %v58 = vmul.f32 0.5, %v57
    %v59 = vsub.f32 1.5, %v58
    %v60 = vmul.f32 %v55, %v59
    %v61 = vmul.f32 %v53, %v60
    %vm62 = vcmp.eq.f32.partialorder %v53, inf
    %v63 = vsel %vm62, %v53, %v61
    %vm64 = vcmp.eq.f32.partialorder %v53, 0.0
    %v65 = vand.u32 %v53, 2147483648
    %v66 = vsel %vm64, %v65, %v63
    %v67 = vrsqrt.pop %v54
    %v68 = vmul.f32 %v67, %v54
    %v69 = vmul.f32 %v68, %v67
    %v70 = vmul.f32 0.5, %v69
    %v71 = vsub.f32 1.5, %v70
    %v72 = vmul.f32 %v67, %v71
    %v73 = vmul.f32 %v54, %v72
    %vm74 = vcmp.eq.f32.partialorder %v54, inf
    %v75 = vsel %vm74, %v54, %v73
    %vm76 = vcmp.eq.f32.partialorder %v54, 0.0
    %v77 = vand.u32 %v54, 2147483648
    %v78 = vsel %vm76, %v77, %v75
    %v79 = vmul.f32 %v47, 0.7648422
    %v80 = vmul.f32 %v48, 0.7648422
    %v81 = vmul.f32 %v66, 0.64421767
    %v82 = vmul.f32 %v78, 0.64421767
    %v83 = vsub.f32 %v79, %v81
    %v84 = vsub.f32 %v80, %v82
    %v85 = vsub.f32 %v47, -0.7648422
    %v86 = vsub.f32 %v48, -0.7648422
    %vm87 = vcmp.gt.f32.partialorder %v85, 0.0
    %vm88 = vcmp.gt.f32.partialorder %v86, 0.0
    %v89 = vsub.f32 %v47, 0.45095238
    %v90 = vsub.f32 %v48, 0.45095238
    %v91 = vsel %vm87, %v83, %v89
    %v92 = vsel %vm88, %v84, %v90
    %v93 = vlaneseq
    %v94 = vand.u32 %v93, 127
    %v95 = vadd.s32 %v94, 128
    %96 = vset.pattern.permute.xlu0 0
    %97 = vperm.xlu0 %96, %v28
    %v98 = vpop.permute.xlu0 %97
    %vm99 = vcmp.eq.s32.totalorder %v94, %v98
    %vm100 = vcmp.eq.s32.totalorder %v95, %v98
    %v101 = vsel %vm99, %v91, %v47
    %v102 = vsel %vm100, %v92, %v48
    %v103 = vmul.f32 %v101, 30.0
    %v104 = vmul.f32 %v102, 30.0
    %105 = vst [vmem:[#allocation5] sm:$0xff] %v103
    %106 = vst.msk [vmem:[#allocation5 + $0x8] sm:$0xff] %vm31, %v104
    // Predicated region
    $region14: #{tpu_custom_call.1} parent=1 // pred_check
      _
    $region15: #{tpu_custom_call.1} parent=1 // pred_check_branch
      %108 = sbr.rel (0) target = $region17
    $region16: #{tpu_custom_call.1} parent=1 // pred_region
      %110 = vsyncadd [#allocation4], 0
      %s112 = sshll.u32 [#allocation5], 4
      %s113 = int_to_ptr.vmem [resolvable:$true] %s112
      %s114 = sshll.u32 %s2, 4
      %s115 = int_to_ptr.hbm [resolvable:$true] %s114
      %117 = dma.vmem_to_hbm [thread:$0]  %s113, 256, %s115, [#allocation4]
    $region17: #{tpu_custom_call.1} parent=1 // pred_fallthru
      _
    // Predicated region
    $region18: #{tpu_custom_call.1} parent=1 // pred_check
      _
    $region19: #{tpu_custom_call.1} parent=1 // pred_check_branch
      %119 = sbr.rel (0) target = $region21
    $region20: #{tpu_custom_call.1} parent=1 // pred_region
      %121 = dma.done [#allocation4], 256
    $region21: #{tpu_custom_call.1} parent=1 // pred_fallthru
      _
    %122 = vsyncpa [#allocation3], 1
    %123 = vsyncpa [#allocation4], 1

</llo_original>
